<compile_context>
chip_gen: v7x
topology: tpu7x:2x2x1
jax: 0.10.0
libtpu: 0.0.40
codegen_flags: <defaults>
</compile_context>

<pallas_src>
import functools
import math

import numpy as np
import jax
import jax.numpy as jnp
from jax.experimental import pallas as pl
from jax.experimental.pallas import tpu as pltpu


def _round_up(n, m):
    return ((n + m - 1) // m) * m


def _decoder_kernel(x_ref, w1_ref, b1_ref, w2_ref, b2_ref, o_ref, *, act_dtype):
    # Layer 1: Linear(latent -> hidden), f32 accumulation on the MXU.
    h = jnp.dot(x_ref[...], w1_ref[...], preferred_element_type=jnp.float32)
    # Bias + Sigmoid.  act_dtype=bf16 uses the EUP's bf16 path (v6e/v7x);
    # act_dtype=f32 is the exact path (and the v5e path).
    h = jax.nn.sigmoid((h + b1_ref[...]).astype(act_dtype))
    # Match the second matmul's input dtype (no-op on the f32 path).
    h = h.astype(w2_ref.dtype)
    # Layer 2: Linear(hidden -> feature), no activation (norm_output=False).
    y = jnp.dot(h, w2_ref[...], preferred_element_type=jnp.float32)
    o_ref[...] = (y + b2_ref[...]).astype(o_ref.dtype)


def _device_is_v5():
    try:
        return "v5" in jax.devices()[0].device_kind.lower()
    except Exception:
        return False


def decoder_forward(x, w1, b1, w2, b2, *, block_m=None, compute_dtype=None,
                    out_dtype=None):
    """Fused 2-layer decoder forward.

    x:  [B, latent]       w1: [latent, hidden]   b1: [1, hidden]
    w2: [hidden, feature] b2: [1, feature]       -> [B, feature]

    compute_dtype: optional matmul-input dtype (e.g. jnp.bfloat16); accumulation
                   is always f32.  None => exact f32 math.
    out_dtype:     optional output dtype (e.g. jnp.bfloat16 to halve HBM output
                   traffic, the actual bottleneck).  None => x.dtype.
    """
    B, latent = x.shape
    hidden, feature = w2.shape
    out_dtype = x.dtype if out_dtype is None else out_dtype

    is_v5 = _device_is_v5()
    if block_m is None:
        # v5e: 16 MiB default scoped VMEM -> keep tiles modest. v6e/v7x: go big.
        block_m = 1024 if is_v5 else 2048

    if compute_dtype is not None:
        x_c = x.astype(compute_dtype)
        w1_c = w1.astype(compute_dtype)
        w2_c = w2.astype(compute_dtype)
    else:
        x_c, w1_c, w2_c = x, w1, w2

    use_bf16_act = (compute_dtype is not None
                    and np.dtype(compute_dtype) == np.dtype(jnp.bfloat16)
                    and not is_v5)
    act_dtype = jnp.bfloat16 if use_bf16_act else jnp.float32

    # Batch tile: multiple of 8 (sublane alignment); capped so that the grid
    # has >=2 blocks (lets v7x's two TensorCores split the "parallel" axis).
    if B <= 8:
        tm = B  # single block equal to the full batch (always layout-legal)
    else:
        tm = min(block_m, _round_up(pl.cdiv(B, 2), 8))
    grid = (pl.cdiv(B, tm),)  # ragged last block handled by Pallas (masked writes)

    cost = pl.CostEstimate(
        flops=2 * B * (latent * hidden + hidden * feature),
        transcendentals=B * hidden,
        bytes_accessed=(x_c.size * x_c.dtype.itemsize
                        + w1_c.size * w1_c.dtype.itemsize
                        + b1.size * b1.dtype.itemsize
                        + w2_c.size * w2_c.dtype.itemsize
                        + b2.size * b2.dtype.itemsize
                        + B * feature * np.dtype(out_dtype).itemsize),
    )

    kernel = functools.partial(_decoder_kernel, act_dtype=act_dtype)

    out = pl.pallas_call(
        kernel,
        out_shape=jax.ShapeDtypeStruct((B, feature), out_dtype),
        grid_spec=pltpu.PrefetchScalarGridSpec(
            num_scalar_prefetch=0,
            grid=grid,
            in_specs=[
                # x: one batch tile per grid step.
                pl.BlockSpec((tm, latent), lambda i: (i, 0)),
                # Weights / biases: constant block index -> VMEM-resident,
                # fetched once, not re-DMA'd across grid steps.
                pl.BlockSpec((latent, hidden), lambda i: (0, 0)),
                pl.BlockSpec((1, hidden), lambda i: (0, 0)),
                pl.BlockSpec((hidden, feature), lambda i: (0, 0)),
                pl.BlockSpec((1, feature), lambda i: (0, 0)),
            ],
            out_specs=pl.BlockSpec((tm, feature), lambda i: (i, 0)),
        ),
        compiler_params=pltpu.CompilerParams(
            # Batch grid steps are independent: shard across TCs on v7x.
            dimension_semantics=("parallel",),
            vmem_limit_bytes=32 << 20,
        ),
        cost_estimate=cost,
    )(x_c, w1_c, b1, w2_c, b2)

    return out


def init_decoder_params(key, latent_dims, hidden=128, feature_size=784,
                        dtype=jnp.float32):
    """Deterministic init mimicking torch.nn.Linear defaults:
    U(-1/sqrt(fan_in), 1/sqrt(fan_in)) for both weights and biases."""
    k1, k2, k3, k4 = jax.random.split(key, 4)
    bound1 = 1.0 / math.sqrt(latent_dims)
    bound2 = 1.0 / math.sqrt(hidden)
    # Stored as [in, out] (transposed vs. torch's [out, in]) so kernel uses x @ W.
    w1 = jax.random.uniform(k1, (latent_dims, hidden), dtype, -bound1, bound1)
    b1 = jax.random.uniform(k2, (1, hidden), dtype, -bound1, bound1)
    w2 = jax.random.uniform(k3, (hidden, feature_size), dtype, -bound2, bound2)
    b2 = jax.random.uniform(k4, (1, feature_size), dtype, -bound2, bound2)
    return w1, b1, w2, b2


if __name__ == "__main__":
    latent_dims = 32
    hidden = 128
    feature_size = 784
    batch = 12  # small demo batch; 12 % 8 != 0 exercises the ragged last block

    key = jax.random.PRNGKey(0)
    kx, kp = jax.random.split(key)
    x = jax.random.normal(kx, (batch, latent_dims), dtype=jnp.float32)
    w1, b1, w2, b2 = init_decoder_params(kp, latent_dims, hidden, feature_size)

    # Pure-JAX reference (same math as the PyTorch module).
    ref = jax.nn.sigmoid(x @ w1 + b1) @ w2 + b2

    # Exact f32 path (default dtypes).
    out = jax.block_until_ready(decoder_forward(x, w1, b1, w2, b2))
    assert out.shape == (batch, feature_size)
    assert out.dtype == jnp.float32
    assert jnp.allclose(out, ref, atol=1e-5, rtol=1e-5)

    # bf16 matmul-input path (f32 accumulation, f32 output).
    out_bf16_in = jax.block_until_ready(
        decoder_forward(x, w1, b1, w2, b2, compute_dtype=jnp.bfloat16))
    assert out_bf16_in.shape == (batch, feature_size)
    assert jnp.allclose(out_bf16_in, ref, atol=5e-2, rtol=5e-2)

    # bf16-output path (exact f32 compute): the traffic-halving variant.
    out_bf16_out = jax.block_until_ready(
        decoder_forward(x, w1, b1, w2, b2, out_dtype=jnp.bfloat16))
    assert out_bf16_out.shape == (batch, feature_size)
    assert out_bf16_out.dtype == jnp.bfloat16
    assert jnp.allclose(out_bf16_out.astype(jnp.float32), ref,
                        atol=2e-2, rtol=2e-2)

    print("KERNEL_OK")
</pallas_src>

<mosaic_0001>
module attributes {stable_mosaic.version = 11 : i64} {
  func.func @_decoder_kernel(%arg0: i32, %arg1: memref<8x32xf32, #tpu.memory_space<vmem>>, %arg2: memref<32x128xf32, #tpu.memory_space<vmem>>, %arg3: memref<1x128xf32, #tpu.memory_space<vmem>>, %arg4: memref<128x784xf32, #tpu.memory_space<vmem>>, %arg5: memref<1x784xf32, #tpu.memory_space<vmem>>, %arg6: memref<8x784xf32, #tpu.memory_space<vmem>>) attributes {dimension_semantics = [#tpu.dimension_semantics<parallel>], iteration_bounds = array<i64: 2>, scalar_prefetch = 0 : i64, scratch_operands = 0 : i64, tpu.core_type = #tpu.core_type<tc>, window_params = [{transform_indices = @transform_0, window_bounds = array<i64: 8, 32>}, {pipeline_mode = #tpu.pipeline_mode<synchronous>, transform_indices = @transform_1, window_bounds = array<i64: 32, 128>}, {pipeline_mode = #tpu.pipeline_mode<synchronous>, transform_indices = @transform_2, window_bounds = array<i64: 1, 128>}, {pipeline_mode = #tpu.pipeline_mode<synchronous>, transform_indices = @transform_3, window_bounds = array<i64: 128, 784>}, {pipeline_mode = #tpu.pipeline_mode<synchronous>, transform_indices = @transform_4, window_bounds = array<i64: 1, 784>}, {transform_indices = @transform_5, window_bounds = array<i64: 8, 784>}]} {
    %c0 = arith.constant 0 : index
    %c0_0 = arith.constant 0 : index
    %0 = vector.load %arg1[%c0, %c0_0] : memref<8x32xf32, #tpu.memory_space<vmem>>, vector<8x32xf32>
    %c0_1 = arith.constant 0 : index
    %c0_2 = arith.constant 0 : index
    %1 = vector.load %arg2[%c0_1, %c0_2] : memref<32x128xf32, #tpu.memory_space<vmem>>, vector<32x128xf32>
    %cst = arith.constant dense<0.000000e+00> : vector<8x128xf32>
    %2 = tpu.matmul %0, %1, %cst {dimension_numbers = #tpu.dot_dimension_numbers<[1], [0], [0], [1], [0, 0, 1, 1], [], []>} : vector<8x32xf32>, vector<32x128xf32>, vector<8x128xf32> -> vector<8x128xf32>
    %c0_3 = arith.constant 0 : index
    %c0_4 = arith.constant 0 : index
    %3 = vector.load %arg3[%c0_3, %c0_4] : memref<1x128xf32, #tpu.memory_space<vmem>>, vector<1x128xf32>
    %4 = vector.broadcast %3 : vector<1x128xf32> to vector<8x128xf32>
    %5 = arith.addf %2, %4 : vector<8x128xf32>
    %6 = arith.negf %5 : vector<8x128xf32>
    %7 = math.exp %6 : vector<8x128xf32>
    %cst_5 = arith.constant 1.000000e+00 : f32
    %8 = vector.broadcast %cst_5 : f32 to vector<8x128xf32>
    %9 = arith.addf %8, %7 : vector<8x128xf32>
    %10 = arith.divf %8, %9 : vector<8x128xf32>
    %c0_6 = arith.constant 0 : index
    %c0_7 = arith.constant 0 : index
    %11 = vector.load %arg4[%c0_6, %c0_7] : memref<128x784xf32, #tpu.memory_space<vmem>>, vector<128x784xf32>
    %cst_8 = arith.constant dense<0.000000e+00> : vector<8x784xf32>
    %12 = tpu.matmul %10, %11, %cst_8 {dimension_numbers = #tpu.dot_dimension_numbers<[1], [0], [0], [1], [0, 0, 1, 1], [], []>} : vector<8x128xf32>, vector<128x784xf32>, vector<8x784xf32> -> vector<8x784xf32>
    %c0_9 = arith.constant 0 : index
    %c0_10 = arith.constant 0 : index
    %13 = vector.load %arg5[%c0_9, %c0_10] : memref<1x784xf32, #tpu.memory_space<vmem>>, vector<1x784xf32>
    %14 = vector.broadcast %13 : vector<1x784xf32> to vector<8x784xf32>
    %15 = arith.addf %12, %14 : vector<8x784xf32>
    %c0_11 = arith.constant 0 : index
    %c0_12 = arith.constant 0 : index
    %16 = vector.load %arg6[%c0_11, %c0_12] : memref<8x784xf32, #tpu.memory_space<vmem>>, vector<8x784xf32>
    tpu.vector_store %arg6[%c0_11, %c0_12], %15 {strides = array<i32>} : memref<8x784xf32, #tpu.memory_space<vmem>>, vector<8x784xf32>,
    return
  }
  func.func @transform_0(%arg0: i32) -> (i32, i32) {
    %c0_i32 = arith.constant 0 : i32
    %c0_i32_0 = arith.constant 0 : i32
    return %arg0, %c0_i32 : i32, i32
  }
  func.func @transform_1(%arg0: i32) -> (i32, i32) {
    %c0_i32 = arith.constant 0 : i32
    %c0_i32_0 = arith.constant 0 : i32
    %c0_i32_1 = arith.constant 0 : i32
    return %c0_i32, %c0_i32_0 : i32, i32
  }
  func.func @transform_2(%arg0: i32) -> (i32, i32) {
    %c0_i32 = arith.constant 0 : i32
    %c0_i32_0 = arith.constant 0 : i32
    %c0_i32_1 = arith.constant 0 : i32
    return %c0_i32, %c0_i32_0 : i32, i32
  }
  func.func @transform_3(%arg0: i32) -> (i32, i32) {
    %c0_i32 = arith.constant 0 : i32
    %c0_i32_0 = arith.constant 0 : i32
    %c0_i32_1 = arith.constant 0 : i32
    return %c0_i32, %c0_i32_0 : i32, i32
  }
  func.func @transform_4(%arg0: i32) -> (i32, i32) {
    %c0_i32 = arith.constant 0 : i32
    %c0_i32_0 = arith.constant 0 : i32
    %c0_i32_1 = arith.constant 0 : i32
    return %c0_i32, %c0_i32_0 : i32, i32
  }
  func.func @transform_5(%arg0: i32) -> (i32, i32) {
    %c0_i32 = arith.constant 0 : i32
    %c0_i32_0 = arith.constant 0 : i32
    return %arg0, %c0_i32 : i32, i32
  }
}

</mosaic_0001>

<llo_original>
// kernel: tpu_custom_call.1
$region0: #{tpu_custom_call.1}
  #allocation0 [shape = 'u32[]', space=smem, size = 0x4, offset = 0x4, fixed_abs, tag = 'smem constant byte address 0x4 - core index']
  #allocation1 [shape = 'u32[144,128]{1,0:T(1,128)}', space=vmem, size = 0x12000, scoped, tag = 'internal scratch']
  %s0 = inlined_call_operand.vmem [shape: f32[12,32], index: 0, kind: input, shape index: {}]
  %s1 = inlined_call_operand.vmem [shape: f32[32,128], index: 1, kind: input, shape index: {}]
  %s2 = inlined_call_operand.vmem [shape: f32[1,128], index: 2, kind: input, shape index: {}]
  %s3 = inlined_call_operand.vmem [shape: f32[128,784], index: 3, kind: input, shape index: {}]
  %s4 = inlined_call_operand.vmem [shape: f32[1,784], index: 4, kind: input, shape index: {}]
  %s5 = inlined_call_operand.hbm [shape: f32[12,784], index: 5, kind: output, shape index: {}]
  %s6 = sld [smem:[#allocation0]]
  $region53: #{tpu_custom_call.1} parent=0
    _
  %s8 = ssub.s32 1, %s6
  %s9 = scalar_select 0, %s8, %s6
  $region1: #{tpu_custom_call.1} parent=0
    #allocation2 [shape = 'u8[57344]{0}', space=vmem, size = 0xe000, scoped, tag = 'output window, operand 0']
    #allocation3 [shape = 's32[2]{0}', space=sflag, size = 0x8, scoped, tag = 'scoped memory for tpu_custom_call.1']
    %10 = vsyncpa [#allocation3], 0
    %s11 = scalar_lea.sflag [#allocation3], 1
    %12 = vsyncpa %s11, 0
    loop: start=0, step=1, limit=4
    $region2: #{tpu_custom_call.1} parent=1 // loop_pre_header
      _
    $region3: #{tpu_custom_call.1} parent=1 // loop_header
      %s14 = sphi 0, %s18
      %p15 = scmp.ge.s32.totalorder %s14, 4
      %s24 = sphi 0, %s26
      %s27 = sphi 0, %s24
      %s28 = sphi 0, %s27
      %s44 = sphi 0, %s28
      %s48 = sphi 0, %s48
      %s50 = sphi 0, %s48
      %s51 = sphi 0, %s50
      %s65 = sphi 0, %s51
      %s69 = sphi 0, %s69
      %s71 = sphi 0, %s69
      %s72 = sphi 0, %s71
      %s86 = sphi 0, %s72
      %s90 = sphi 0, %s90
      %s92 = sphi 0, %s90
      %s93 = sphi 0, %s92
      %s107 = sphi 0, %s93
      %s111 = sphi 0, %s111
      %s113 = sphi 0, %s111
      %s114 = sphi 0, %s113
      %s128 = sphi 0, %s114
      %s134 = sphi 0, %s136
      %s137 = sphi 0, %s134
      %s138 = sphi 0, %s137
      %s154 = sphi 0, %s138
    $region4: #{tpu_custom_call.1} parent=1 // loop_header_branch
      %17 = sbr.rel (%p15) target = $region8
    $region5: #{tpu_custom_call.1} parent=1 // loop_body
      %s19 = ssub.s32 %s14, 1
      %s20 = ssub.s32 %s14, 2
      %s21 = sadd.s32 %s14, 1
      %s22 = ssub.s32 %s14, %s21
      %p23 = scmp.eq.s32.totalorder %s22, 0
      %s25 = sadd.s32 %s24, 1
      %s26 = scalar_select %p23, %s24, %s25
      %p29 = pneg %p23
      %p30 = scmp.eq.s32.totalorder %s14, 1
      %p31 = por %p29, %p30
      %p32 = scmp.ne.s32.totalorder %s24, %s27
      %p33 = scmp.eq.s32.totalorder %s14, 0
      %p34 = por %p32, %p33
      %p35 = scmp.ne.s32.totalorder %s24, %s27
      %p36 = scmp.eq.s32.totalorder %s19, 1
      %p37 = por %p35, %p36
      %p38 = scmp.ne.s32.totalorder %s27, %s28
      %p39 = scmp.eq.s32.totalorder %s19, 0
      %p40 = por %p38, %p39
      %p41 = scmp.ne.s32.totalorder %s27, %s28
      %p42 = scmp.eq.s32.totalorder %s20, 1
      %p43 = por %p41, %p42
      %p45 = scmp.ne.s32.totalorder %s28, %s44
      %p46 = scmp.eq.s32.totalorder %s20, 0
      %p47 = por %p45, %p46
      %s49 = sadd.s32 %s48, 1
      %p52 = scmp.eq.s32.totalorder %s14, 1
      %p53 = scmp.ne.s32.totalorder %s48, %s50
      %p54 = scmp.eq.s32.totalorder %s14, 0
      %p55 = por %p53, %p54
      %p56 = scmp.ne.s32.totalorder %s48, %s50
      %p57 = scmp.eq.s32.totalorder %s19, 1
      %p58 = por %p56, %p57
      %p59 = scmp.ne.s32.totalorder %s50, %s51
      %p60 = scmp.eq.s32.totalorder %s19, 0
      %p61 = por %p59, %p60
      %p62 = scmp.ne.s32.totalorder %s50, %s51
      %p63 = scmp.eq.s32.totalorder %s20, 1
      %p64 = por %p62, %p63
      %p66 = scmp.ne.s32.totalorder %s51, %s65
      %p67 = scmp.eq.s32.totalorder %s20, 0
      %p68 = por %p66, %p67
      %s70 = sadd.s32 %s69, 1
      %p73 = scmp.eq.s32.totalorder %s14, 1
      %p74 = scmp.ne.s32.totalorder %s69, %s71
      %p75 = scmp.eq.s32.totalorder %s14, 0
      %p76 = por %p74, %p75
      %p77 = scmp.ne.s32.totalorder %s69, %s71
      %p78 = scmp.eq.s32.totalorder %s19, 1
      %p79 = por %p77, %p78
      %p80 = scmp.ne.s32.totalorder %s71, %s72
      %p81 = scmp.eq.s32.totalorder %s19, 0
      %p82 = por %p80, %p81
      %p83 = scmp.ne.s32.totalorder %s71, %s72
      %p84 = scmp.eq.s32.totalorder %s20, 1
      %p85 = por %p83, %p84
      %p87 = scmp.ne.s32.totalorder %s72, %s86
      %p88 = scmp.eq.s32.totalorder %s20, 0
      %p89 = por %p87, %p88
      %s91 = sadd.s32 %s90, 1
      %p94 = scmp.eq.s32.totalorder %s14, 1
      %p95 = scmp.ne.s32.totalorder %s90, %s92
      %p96 = scmp.eq.s32.totalorder %s14, 0
      %p97 = por %p95, %p96
      %p98 = scmp.ne.s32.totalorder %s90, %s92
      %p99 = scmp.eq.s32.totalorder %s19, 1
      %p100 = por %p98, %p99
      %p101 = scmp.ne.s32.totalorder %s92, %s93
      %p102 = scmp.eq.s32.totalorder %s19, 0
      %p103 = por %p101, %p102
      %p104 = scmp.ne.s32.totalorder %s92, %s93
      %p105 = scmp.eq.s32.totalorder %s20, 1
      %p106 = por %p104, %p105
      %p108 = scmp.ne.s32.totalorder %s93, %s107
      %p109 = scmp.eq.s32.totalorder %s20, 0
      %p110 = por %p108, %p109
      %s112 = sadd.s32 %s111, 1
      %p115 = scmp.eq.s32.totalorder %s14, 1
      %p116 = scmp.ne.s32.totalorder %s111, %s113
      %p117 = scmp.eq.s32.totalorder %s14, 0
      %p118 = por %p116, %p117
      %p119 = scmp.ne.s32.totalorder %s111, %s113
      %p120 = scmp.eq.s32.totalorder %s19, 1
      %p121 = por %p119, %p120
      %p122 = scmp.ne.s32.totalorder %s113, %s114
      %p123 = scmp.eq.s32.totalorder %s19, 0
      %p124 = por %p122, %p123
      %p125 = scmp.ne.s32.totalorder %s113, %s114
      %p126 = scmp.eq.s32.totalorder %s20, 1
      %p127 = por %p125, %p126
      %p129 = scmp.ne.s32.totalorder %s114, %s128
      %p130 = scmp.eq.s32.totalorder %s20, 0
      %p131 = por %p129, %p130
      %s132 = ssub.s32 %s14, %s21
      %p133 = scmp.eq.s32.totalorder %s132, 0
      %s135 = sadd.s32 %s134, 1
      %s136 = scalar_select %p133, %s134, %s135
      %p139 = pneg %p133
      %p140 = scmp.eq.s32.totalorder %s14, 1
      %p141 = por %p139, %p140
      %p142 = scmp.ne.s32.totalorder %s134, %s137
      %p143 = scmp.eq.s32.totalorder %s14, 0
      %p144 = por %p142, %p143
      %p145 = scmp.ne.s32.totalorder %s134, %s137
      %p146 = scmp.eq.s32.totalorder %s19, 1
      %p147 = por %p145, %p146
      %p148 = scmp.ne.s32.totalorder %s137, %s138
      %p149 = scmp.eq.s32.totalorder %s19, 0
      %p150 = por %p148, %p149
      %p151 = scmp.ne.s32.totalorder %s137, %s138
      %p152 = scmp.eq.s32.totalorder %s20, 1
      %p153 = por %p151, %p152
      %p155 = scmp.ne.s32.totalorder %s138, %s154
      %p156 = scmp.eq.s32.totalorder %s20, 0
      %p157 = por %p155, %p156
      %p158 = scmp.le.s32.totalorder 1, %s14
      %p159 = scmp.lt.s32.totalorder %s14, 3
      %p160 = pnand %p158, %p159
      %p161 = pneg %p160
      // Predicated region
      $region9: #{tpu_custom_call.1} parent=5 // pred_check
        _
      $region10: #{tpu_custom_call.1} parent=5 // pred_check_branch
        %163 = sbr.rel (%p160) target = $region12
      $region11: #{tpu_custom_call.1} parent=5 // pred_region
        %s164 = ssub.s32 %s14, 1
        // Predicated region
        $region13: #{tpu_custom_call.1} parent=11 // pred_check
          %p165 = pneg %p61
        $region14: #{tpu_custom_call.1} parent=11 // pred_check_branch
          %167 = sbr.rel (%p165) target = $region16
        $region15: #{tpu_custom_call.1} parent=11 // pred_region
          _
        $region16: #{tpu_custom_call.1} parent=11 // pred_fallthru
          _
        // Predicated region
        $region17: #{tpu_custom_call.1} parent=11 // pred_check
          %p168 = pneg %p82
        $region18: #{tpu_custom_call.1} parent=11 // pred_check_branch
          %170 = sbr.rel (%p168) target = $region20
        $region19: #{tpu_custom_call.1} parent=11 // pred_region
          _
        $region20: #{tpu_custom_call.1} parent=11 // pred_fallthru
          _
        // Predicated region
        $region21: #{tpu_custom_call.1} parent=11 // pred_check
          %p171 = pneg %p103
        $region22: #{tpu_custom_call.1} parent=11 // pred_check_branch
          %173 = sbr.rel (%p171) target = $region24
        $region23: #{tpu_custom_call.1} parent=11 // pred_region
          _
        $region24: #{tpu_custom_call.1} parent=11 // pred_fallthru
          _
        // Predicated region
        $region25: #{tpu_custom_call.1} parent=11 // pred_check
          %p174 = pneg %p124
        $region26: #{tpu_custom_call.1} parent=11 // pred_check_branch
          %176 = sbr.rel (%p174) target = $region28
        $region27: #{tpu_custom_call.1} parent=11 // pred_region
          _
        $region28: #{tpu_custom_call.1} parent=11 // pred_fallthru
          _
      $region12: #{tpu_custom_call.1} parent=5 // pred_fallthru
        _
      %p177 = scmp.lt.s32.totalorder %s14, 2
      // Predicated region
      $region29: #{tpu_custom_call.1} parent=5 // pred_check
        %p178 = pneg %p177
      $region30: #{tpu_custom_call.1} parent=5 // pred_check_branch
        %180 = sbr.rel (%p178) target = $region32
      $region31: #{tpu_custom_call.1} parent=5 // pred_region
        // Predicated region
        $region33: #{tpu_custom_call.1} parent=31 // pred_check
          %p181 = pneg %p34
        $region34: #{tpu_custom_call.1} parent=31 // pred_check_branch
          %183 = sbr.rel (%p181) target = $region36
        $region35: #{tpu_custom_call.1} parent=31 // pred_region
          %p184 = scmp.lt.s32.totalorder %s14, 1
          %s185 = scalar_select %p184, %s14, 1
          %s186 = smul.addr %s185, 8
          %s187 = scalar_lea.vmem %s0, %s186
        $region36: #{tpu_custom_call.1} parent=31 // pred_fallthru
          _
      $region32: #{tpu_custom_call.1} parent=5 // pred_fallthru
        _
      %p188 = scmp.le.s32.totalorder 1, %s14
      %p189 = scmp.lt.s32.totalorder %s14, 3
      %p190 = pnand %p188, %p189
      %p191 = pneg %p190
      // Predicated region
      $region37: #{tpu_custom_call.1} parent=5 // pred_check
        _
      $region38: #{tpu_custom_call.1} parent=5 // pred_check_branch
        %193 = sbr.rel (%p190) target = $region40
      $region39: #{tpu_custom_call.1} parent=5 // pred_region
        %s194 = ssub.s32 %s14, 1
        %p195 = scmp.lt.s32.totalorder %s19, 1
        %s196 = scalar_select %p195, %s19, 1
        %s197 = smul.addr %s196, 8
        %s198 = scalar_lea.vmem %s0, %s197
        %p199 = pneg %p40
        %p200 = pneg %p37
        %p201 = pneg %p61
        %p202 = pneg %p58
        %p203 = pneg %p82
        %p204 = pneg %p79
        %p205 = pneg %p103
        %p206 = pneg %p100
        %p207 = pneg %p124
        %p208 = pneg %p121
        %p209 = pneg %p150
        %p210 = pneg %p147
        %s211 = sand.u32 %s137, 1
        %s212 = scalar_lea.sflag [#allocation3], %s211
        %s213 = sand.u32 %s137, 1
        %s214 = smul.addr %s213, 56
        %s215 = scalar_lea.vmem [#allocation2], %s214
        %p216 = scmp.lt.s32.totalorder %s19, 1
        %s217 = scalar_select %p216, %s19, 1
        %s218 = smul.addr %s217, 8
        %s219 = scalar_lea.vmem %s0, %s218
        %v220 = vld [vmem:[%s219] sm:$0xff]
        %v221 = vld [vmem:[%s1] sm:$0xff]
        %v222 = vld [vmem:[%s1 + $0x8] sm:$0xff]
        %v223 = vld [vmem:[%s1 + $0x10] sm:$0xff]
        %v224 = vld [vmem:[%s1 + $0x18] sm:$0xff]
        %v225 = vld [vmem:[%s2] sm:$0x1]
        %v227 = vlaneseq
        %v228 = vshrl.u32 %v227, 7
        %v229 = vsub.s32 0, %v228
        %v230 = vrot.slane %v225, %v229
        %vm232 = vcmask 261120
        %v234 = vsel %vm232, %v220, 0
        %236 = vmatprep.subr.mxu0 0.0
        %237 = vmatpush1.msra.mxu0 %v221
        %238 = vmatprep.subr.mxu0 0.0
        %239 = vmatpush1.msra.mxu0 %v222
        %240 = vmatprep.subr.mxu0 0.0
        %241 = vmatpush1.msra.mxu0 %v223
        %242 = vmatprep.subr.mxu0 0.0
        %243 = vmatpush1.msra.mxu0 %v224
        %244 = vmatprep.subr.mxu0 0.0
        %245 = vmatpush1.msra.mxu0 0.0
        %246 = vmatprep.subr.mxu0 0.0
        %247 = vmatpush1.msra.mxu0 0.0
        %248 = vmatprep.subr.mxu0 0.0
        %249 = vmatpush1.msra.mxu0 0.0
        %250 = vmatprep.subr.mxu0 0.0
        %251 = vmatpush1.msra.mxu0 0.0
        %252 = vmatprep.subr.mxu0 0.0
        %253 = vmatpush1.msra.mxu0 0.0
        %254 = vmatprep.subr.mxu0 0.0
        %255 = vmatpush1.msra.mxu0 0.0
        %256 = vmatprep.subr.mxu0 0.0
        %257 = vmatpush1.msra.mxu0 0.0
        %258 = vmatprep.subr.mxu0 0.0
        %259 = vmatpush1.msra.mxu0 0.0
        %260 = vmatprep.subr.mxu0 0.0
        %261 = vmatpush1.msra.mxu0 0.0
        %262 = vmatprep.subr.mxu0 0.0
        %263 = vmatpush1.msra.mxu0 0.0
        %264 = vmatprep.subr.mxu0 0.0
        %265 = vmatpush1.msra.mxu0 0.0
        %266 = vmatprep.subr.mxu0 0.0
        %267 = vmatpush1.msra.mxu0 0.0
        %268 = vmatprep.subr.mxu0 0.0
        %269 = vmatpush1.msra.mxu0 0.0
        %270 = vmatprep.subr.mxu0 0.0
        %271 = vmatpush1.msra.mxu0 0.0
        %272 = vmatprep.subr.mxu0 0.0
        %273 = vmatpush1.msra.mxu0 0.0
        %274 = vmatprep.subr.mxu0 0.0
        %275 = vmatpush1.msra.mxu0 0.0
        %276 = vmatprep.subr.mxu0 0.0
        %277 = vmatpush1.msra.mxu0 0.0
        %278 = vmatprep.subr.mxu0 0.0
        %279 = vmatpush1.msra.mxu0 0.0
        %280 = vmatprep.subr.mxu0 0.0
        %281 = vmatpush1.msra.mxu0 0.0
        %282 = vmatprep.subr.mxu0 0.0
        %283 = vmatpush1.msra.mxu0 0.0
        %284 = vmatprep.subr.mxu0 0.0
        %285 = vmatpush1.msra.mxu0 0.0
        %286 = vmatprep.subr.mxu0 0.0
        %287 = vmatpush1.msra.mxu0 0.0
        %288 = vmatprep.subr.mxu0 0.0
        %289 = vmatpush1.msra.mxu0 0.0
        %290 = vmatprep.subr.mxu0 0.0
        %291 = vmatpush1.msra.mxu0 0.0
        %292 = vmatprep.subr.mxu0 0.0
        %293 = vmatpush1.msra.mxu0 0.0
        %294 = vmatprep.subr.mxu0 0.0
        %295 = vmatpush1.msra.mxu0 0.0
        %296 = vmatprep.subr.mxu0 0.0
        %297 = vmatpush1.msra.mxu0 0.0
        %298 = vmatprep.subr.mxu0 0.0
        %299 = vmatpush1.msra.mxu0 0.0
        %300 = vmatprep.mubr.f32.mxu0 0.0
        %301 = vmatmul.mubr.f32.gmra.mrb[0].mxu0 %v234
        %v302 = vpop.f32.mrb[0].mxu0
        %v303 = vadd.f32 %v230, %v302
        %v304 = vpop.f32.mrb[0].mxu0
        %305 = vdwg.mxu0
        %v306 = vxor.u32 %v303, 2147483648
        %v307 = vmul.f32 %v306, 1.442695
        %v308 = vpow.pop %v307
        %v309 = vadd.f32 %v308, 1.0
        %v310 = vrcp.pop %v309
        %v311 = vmul.f32 1.0, %v310
        %v312 = vld [vmem:[%s3] sm:$0xff]
        %v313 = vld [vmem:[%s3 + $0x8] sm:$0xff]
        %v314 = vld [vmem:[%s3 + $0x10] sm:$0xff]
        %v315 = vld [vmem:[%s3 + $0x18] sm:$0xff]
        %v316 = vld [vmem:[%s3 + $0x20] sm:$0xff]
        %v317 = vld [vmem:[%s3 + $0x28] sm:$0xff]
        %v318 = vld [vmem:[%s3 + $0x30] sm:$0xff]
        %v319 = vld [vmem:[%s3 + $0x38] sm:$0xff]
        %v320 = vld [vmem:[%s3 + $0x40] sm:$0xff]
        %v321 = vld [vmem:[%s3 + $0x48] sm:$0xff]
        %v322 = vld [vmem:[%s3 + $0x50] sm:$0xff]
        %v323 = vld [vmem:[%s3 + $0x58] sm:$0xff]
        %v324 = vld [vmem:[%s3 + $0x60] sm:$0xff]
        %v325 = vld [vmem:[%s3 + $0x68] sm:$0xff]
        %v326 = vld [vmem:[%s3 + $0x70] sm:$0xff]
        %v327 = vld [vmem:[%s3 + $0x78] sm:$0xff]
        %v328 = vld [vmem:[%s3 + $0x80] sm:$0xff]
        %v329 = vld [vmem:[%s3 + $0x88] sm:$0xff]
        %v330 = vld [vmem:[%s3 + $0x90] sm:$0xff]
        %v331 = vld [vmem:[%s3 + $0x98] sm:$0xff]
        %v332 = vld [vmem:[%s3 + $0xa0] sm:$0xff]
        %v333 = vld [vmem:[%s3 + $0xa8] sm:$0xff]
        %v334 = vld [vmem:[%s3 + $0xb0] sm:$0xff]
        %v335 = vld [vmem:[%s3 + $0xb8] sm:$0xff]
        %v336 = vld [vmem:[%s3 + $0xc0] sm:$0xff]
        %v337 = vld [vmem:[%s3 + $0xc8] sm:$0xff]
        %v338 = vld [vmem:[%s3 + $0xd0] sm:$0xff]
        %v339 = vld [vmem:[%s3 + $0xd8] sm:$0xff]
        %v340 = vld [vmem:[%s3 + $0xe0] sm:$0xff]
        %v341 = vld [vmem:[%s3 + $0xe8] sm:$0xff]
        %v342 = vld [vmem:[%s3 + $0xf0] sm:$0xff]
        %v343 = vld [vmem:[%s3 + $0xf8] sm:$0xff]
        %v344 = vld [vmem:[%s3 + $0x100] sm:$0xff]
        %v345 = vld [vmem:[%s3 + $0x108] sm:$0xff]
        %v346 = vld [vmem:[%s3 + $0x110] sm:$0xff]
        %v347 = vld [vmem:[%s3 + $0x118] sm:$0xff]
        %v348 = vld [vmem:[%s3 + $0x120] sm:$0xff]
        %v349 = vld [vmem:[%s3 + $0x128] sm:$0xff]
        %v350 = vld [vmem:[%s3 + $0x130] sm:$0xff]
        %v351 = vld [vmem:[%s3 + $0x138] sm:$0xff]
        %v352 = vld [vmem:[%s3 + $0x140] sm:$0xff]
        %v353 = vld [vmem:[%s3 + $0x148] sm:$0xff]
        %v354 = vld [vmem:[%s3 + $0x150] sm:$0xff]
        %v355 = vld [vmem:[%s3 + $0x158] sm:$0xff]
        %v356 = vld [vmem:[%s3 + $0x160] sm:$0xff]
        %v357 = vld [vmem:[%s3 + $0x168] sm:$0xff]
        %v358 = vld [vmem:[%s3 + $0x170] sm:$0xff]
        %v359 = vld [vmem:[%s3 + $0x178] sm:$0xff]
        %v360 = vld [vmem:[%s3 + $0x180] sm:$0xff]
        %v361 = vld [vmem:[%s3 + $0x188] sm:$0xff]
        %v362 = vld [vmem:[%s3 + $0x190] sm:$0xff]
        %v363 = vld [vmem:[%s3 + $0x198] sm:$0xff]
        %v364 = vld [vmem:[%s3 + $0x1a0] sm:$0xff]
        %v365 = vld [vmem:[%s3 + $0x1a8] sm:$0xff]
        %v366 = vld [vmem:[%s3 + $0x1b0] sm:$0xff]
        %v367 = vld [vmem:[%s3 + $0x1b8] sm:$0xff]
        %v368 = vld [vmem:[%s3 + $0x1c0] sm:$0xff]
        %v369 = vld [vmem:[%s3 + $0x1c8] sm:$0xff]
        %v370 = vld [vmem:[%s3 + $0x1d0] sm:$0xff]
        %v371 = vld [vmem:[%s3 + $0x1d8] sm:$0xff]
        %v372 = vld [vmem:[%s3 + $0x1e0] sm:$0xff]
        %v373 = vld [vmem:[%s3 + $0x1e8] sm:$0xff]
        %v374 = vld [vmem:[%s3 + $0x1f0] sm:$0xff]
        %v375 = vld [vmem:[%s3 + $0x1f8] sm:$0xff]
        %v376 = vld [vmem:[%s3 + $0x200] sm:$0xff]
        %v377 = vld [vmem:[%s3 + $0x208] sm:$0xff]
        %v378 = vld [vmem:[%s3 + $0x210] sm:$0xff]
        %v379 = vld [vmem:[%s3 + $0x218] sm:$0xff]
        %v380 = vld [vmem:[%s3 + $0x220] sm:$0xff]
        %v381 = vld [vmem:[%s3 + $0x228] sm:$0xff]
        %v382 = vld [vmem:[%s3 + $0x230] sm:$0xff]
        %v383 = vld [vmem:[%s3 + $0x238] sm:$0xff]
        %v384 = vld [vmem:[%s3 + $0x240] sm:$0xff]
        %v385 = vld [vmem:[%s3 + $0x248] sm:$0xff]
        %v386 = vld [vmem:[%s3 + $0x250] sm:$0xff]
        %v387 = vld [vmem:[%s3 + $0x258] sm:$0xff]
        %v388 = vld [vmem:[%s3 + $0x260] sm:$0xff]
        %v389 = vld [vmem:[%s3 + $0x268] sm:$0xff]
        %v390 = vld [vmem:[%s3 + $0x270] sm:$0xff]
        %v391 = vld [vmem:[%s3 + $0x278] sm:$0xff]
        %v392 = vld [vmem:[%s3 + $0x280] sm:$0xff]
        %v393 = vld [vmem:[%s3 + $0x288] sm:$0xff]
        %v394 = vld [vmem:[%s3 + $0x290] sm:$0xff]
        %v395 = vld [vmem:[%s3 + $0x298] sm:$0xff]
        %v396 = vld [vmem:[%s3 + $0x2a0] sm:$0xff]
        %v397 = vld [vmem:[%s3 + $0x2a8] sm:$0xff]
        %v398 = vld [vmem:[%s3 + $0x2b0] sm:$0xff]
        %v399 = vld [vmem:[%s3 + $0x2b8] sm:$0xff]
        %v400 = vld [vmem:[%s3 + $0x2c0] sm:$0xff]
        %v401 = vld [vmem:[%s3 + $0x2c8] sm:$0xff]
        %v402 = vld [vmem:[%s3 + $0x2d0] sm:$0xff]
        %v403 = vld [vmem:[%s3 + $0x2d8] sm:$0xff]
        %v404 = vld [vmem:[%s3 + $0x2e0] sm:$0xff]
        %v405 = vld [vmem:[%s3 + $0x2e8] sm:$0xff]
        %v406 = vld [vmem:[%s3 + $0x2f0] sm:$0xff]
        %v407 = vld [vmem:[%s3 + $0x2f8] sm:$0xff]
        %v408 = vld [vmem:[%s3 + $0x300] sm:$0xff]
        %v409 = vld [vmem:[%s3 + $0x308] sm:$0xff]
        %v410 = vld [vmem:[%s3 + $0x310] sm:$0xff]
        %v411 = vld [vmem:[%s3 + $0x318] sm:$0xff]
        %v412 = vld [vmem:[%s3 + $0x320] sm:$0xff]
        %v413 = vld [vmem:[%s3 + $0x328] sm:$0xff]
        %v414 = vld [vmem:[%s3 + $0x330] sm:$0xff]
        %v415 = vld [vmem:[%s3 + $0x338] sm:$0xff]
        %v416 = vld [vmem:[%s3 + $0x340] sm:$0xff]
        %v417 = vld [vmem:[%s3 + $0x348] sm:$0xff]
        %v418 = vld [vmem:[%s3 + $0x350] sm:$0xff]
        %v419 = vld [vmem:[%s3 + $0x358] sm:$0xff]
        %v420 = vld [vmem:[%s3 + $0x360] sm:$0xff]
        %v421 = vld [vmem:[%s3 + $0x368] sm:$0xff]
        %v422 = vld [vmem:[%s3 + $0x370] sm:$0xff]
        %v423 = vld [vmem:[%s3 + $0x378] sm:$0xff]
        %v424 = vld [vmem:[%s4] sm:$0x7f]
        %v426 = vlaneseq
        %v427 = vshrl.u32 %v426, 7
        %v428 = vsub.s32 0, %v427
        %v429 = vrot.slane %v424, %v428
        %v430 = vlaneseq
        %v431 = vshrl.u32 %v430, 7
        %v432 = vsub.s32 1, %v431
        %v433 = vrot.slane %v424, %v432
        %v434 = vlaneseq
        %v435 = vshrl.u32 %v434, 7
        %v436 = vsub.s32 2, %v435
        %v437 = vrot.slane %v424, %v436
        %v438 = vlaneseq
        %v439 = vshrl.u32 %v438, 7
        %v440 = vsub.s32 3, %v439
        %v441 = vrot.slane %v424, %v440
        %v442 = vlaneseq
        %v443 = vshrl.u32 %v442, 7
        %v444 = vsub.s32 4, %v443
        %v445 = vrot.slane %v424, %v444
        %v446 = vlaneseq
        %v447 = vshrl.u32 %v446, 7
        %v448 = vsub.s32 5, %v447
        %v449 = vrot.slane %v424, %v448
        %v450 = vlaneseq
        %v451 = vshrl.u32 %v450, 7
        %v452 = vsub.s32 6, %v451
        %v453 = vrot.slane %v424, %v452
        %461 = vmatprep.subr.mxu0 %v313
        %462 = vmatpush1.msra.mxu0 %v312
        %463 = vmatprep.subr.mxu0 %v320
        %464 = vmatpush1.msra.mxu0 %v319
        %465 = vmatprep.subr.mxu0 %v327
        %466 = vmatpush1.msra.mxu0 %v326
        %467 = vmatprep.subr.mxu0 %v334
        %468 = vmatpush1.msra.mxu0 %v333
        %469 = vmatprep.subr.mxu0 %v341
        %470 = vmatpush1.msra.mxu0 %v340
        %471 = vmatprep.subr.mxu0 %v348
        %472 = vmatpush1.msra.mxu0 %v347
        %473 = vmatprep.subr.mxu0 %v355
        %474 = vmatpush1.msra.mxu0 %v354
        %475 = vmatprep.subr.mxu0 %v362
        %476 = vmatpush1.msra.mxu0 %v361
        %477 = vmatprep.subr.mxu0 %v369
        %478 = vmatpush1.msra.mxu0 %v368
        %479 = vmatprep.subr.mxu0 %v376
        %480 = vmatpush1.msra.mxu0 %v375
        %481 = vmatprep.subr.mxu0 %v383
        %482 = vmatpush1.msra.mxu0 %v382
        %483 = vmatprep.subr.mxu0 %v390
        %484 = vmatpush1.msra.mxu0 %v389
        %485 = vmatprep.subr.mxu0 %v397
        %486 = vmatpush1.msra.mxu0 %v396
        %487 = vmatprep.subr.mxu0 %v404
        %488 = vmatpush1.msra.mxu0 %v403
        %489 = vmatprep.subr.mxu0 %v411
        %490 = vmatpush1.msra.mxu0 %v410
        %491 = vmatprep.subr.mxu0 %v418
        %492 = vmatpush1.msra.mxu0 %v417
        %493 = vmatprep.subr.mxu0 0.0
        %494 = vmatpush1.msra.mxu0 0.0
        %495 = vmatprep.subr.mxu0 0.0
        %496 = vmatpush1.msra.mxu0 0.0
        %497 = vmatprep.subr.mxu0 0.0
        %498 = vmatpush1.msra.mxu0 0.0
        %499 = vmatprep.subr.mxu0 0.0
        %500 = vmatpush1.msra.mxu0 0.0
        %501 = vmatprep.subr.mxu0 0.0
        %502 = vmatpush1.msra.mxu0 0.0
        %503 = vmatprep.subr.mxu0 0.0
        %504 = vmatpush1.msra.mxu0 0.0
        %505 = vmatprep.subr.mxu0 0.0
        %506 = vmatpush1.msra.mxu0 0.0
        %507 = vmatprep.subr.mxu0 0.0
        %508 = vmatpush1.msra.mxu0 0.0
        %509 = vmatprep.subr.mxu0 0.0
        %510 = vmatpush1.msra.mxu0 0.0
        %511 = vmatprep.subr.mxu0 0.0
        %512 = vmatpush1.msra.mxu0 0.0
        %513 = vmatprep.subr.mxu0 0.0
        %514 = vmatpush1.msra.mxu0 0.0
        %515 = vmatprep.subr.mxu0 0.0
        %516 = vmatpush1.msra.mxu0 0.0
        %517 = vmatprep.subr.mxu0 0.0
        %518 = vmatpush1.msra.mxu0 0.0
        %519 = vmatprep.subr.mxu0 0.0
        %520 = vmatpush1.msra.mxu0 0.0
        %521 = vmatprep.subr.mxu0 0.0
        %522 = vmatpush1.msra.mxu0 0.0
        %523 = vmatprep.subr.mxu0 0.0
        %524 = vmatpush1.msra.mxu0 0.0
        %525 = vmatprep.mubr.f32.mxu0 0.0
        %526 = vmatmul.mubr.f32.gmra.mrb[0].mxu0 %v311
        %v527 = vpop.f32.mrb[0].mxu0
        %v528 = vadd.f32 %v429, %v527
        %v529 = vpop.f32.mrb[0].mxu0
        %v530 = vadd.f32 %v433, %v529
        %531 = vdwg.mxu0
        %532 = vmatprep.subr.mxu0 %v315
        %533 = vmatpush1.msra.mxu0 %v314
        %534 = vmatprep.subr.mxu0 %v322
        %535 = vmatpush1.msra.mxu0 %v321
        %536 = vmatprep.subr.mxu0 %v329
        %537 = vmatpush1.msra.mxu0 %v328
        %538 = vmatprep.subr.mxu0 %v336
        %539 = vmatpush1.msra.mxu0 %v335
        %540 = vmatprep.subr.mxu0 %v343
        %541 = vmatpush1.msra.mxu0 %v342
        %542 = vmatprep.subr.mxu0 %v350
        %543 = vmatpush1.msra.mxu0 %v349
        %544 = vmatprep.subr.mxu0 %v357
        %545 = vmatpush1.msra.mxu0 %v356
        %546 = vmatprep.subr.mxu0 %v364
        %547 = vmatpush1.msra.mxu0 %v363
        %548 = vmatprep.subr.mxu0 %v371
        %549 = vmatpush1.msra.mxu0 %v370
        %550 = vmatprep.subr.mxu0 %v378
        %551 = vmatpush1.msra.mxu0 %v377
        %552 = vmatprep.subr.mxu0 %v385
        %553 = vmatpush1.msra.mxu0 %v384
        %554 = vmatprep.subr.mxu0 %v392
        %555 = vmatpush1.msra.mxu0 %v391
        %556 = vmatprep.subr.mxu0 %v399
        %557 = vmatpush1.msra.mxu0 %v398
        %558 = vmatprep.subr.mxu0 %v406
        %559 = vmatpush1.msra.mxu0 %v405
        %560 = vmatprep.subr.mxu0 %v413
        %561 = vmatpush1.msra.mxu0 %v412
        %562 = vmatprep.subr.mxu0 %v420
        %563 = vmatpush1.msra.mxu0 %v419
        %564 = vmatprep.subr.mxu0 0.0
        %565 = vmatpush1.msra.mxu0 0.0
        %566 = vmatprep.subr.mxu0 0.0
        %567 = vmatpush1.msra.mxu0 0.0
        %568 = vmatprep.subr.mxu0 0.0
        %569 = vmatpush1.msra.mxu0 0.0
        %570 = vmatprep.subr.mxu0 0.0
        %571 = vmatpush1.msra.mxu0 0.0
        %572 = vmatprep.subr.mxu0 0.0
        %573 = vmatpush1.msra.mxu0 0.0
        %574 = vmatprep.subr.mxu0 0.0
        %575 = vmatpush1.msra.mxu0 0.0
        %576 = vmatprep.subr.mxu0 0.0
        %577 = vmatpush1.msra.mxu0 0.0
        %578 = vmatprep.subr.mxu0 0.0
        %579 = vmatpush1.msra.mxu0 0.0
        %580 = vmatprep.subr.mxu0 0.0
        %581 = vmatpush1.msra.mxu0 0.0
        %582 = vmatprep.subr.mxu0 0.0
        %583 = vmatpush1.msra.mxu0 0.0
        %584 = vmatprep.subr.mxu0 0.0
        %585 = vmatpush1.msra.mxu0 0.0
        %586 = vmatprep.subr.mxu0 0.0
        %587 = vmatpush1.msra.mxu0 0.0
        %588 = vmatprep.subr.mxu0 0.0
        %589 = vmatpush1.msra.mxu0 0.0
        %590 = vmatprep.subr.mxu0 0.0
        %591 = vmatpush1.msra.mxu0 0.0
        %592 = vmatprep.subr.mxu0 0.0
        %593 = vmatpush1.msra.mxu0 0.0
        %594 = vmatprep.subr.mxu0 0.0
        %595 = vmatpush1.msra.mxu0 0.0
        %596 = vmatprep.mubr.f32.mxu0 0.0
        %597 = vmatmul.mubr.f32.gmra.mrb[0].mxu0 %v311
        %v598 = vpop.f32.mrb[0].mxu0
        %v599 = vadd.f32 %v437, %v598
        %v600 = vpop.f32.mrb[0].mxu0
        %v601 = vadd.f32 %v441, %v600
        %602 = vdwg.mxu0
        %603 = vmatprep.subr.mxu0 %v317
        %604 = vmatpush1.msra.mxu0 %v316
        %605 = vmatprep.subr.mxu0 %v324
        %606 = vmatpush1.msra.mxu0 %v323
        %607 = vmatprep.subr.mxu0 %v331
        %608 = vmatpush1.msra.mxu0 %v330
        %609 = vmatprep.subr.mxu0 %v338
        %610 = vmatpush1.msra.mxu0 %v337
        %611 = vmatprep.subr.mxu0 %v345
        %612 = vmatpush1.msra.mxu0 %v344
        %613 = vmatprep.subr.mxu0 %v352
        %614 = vmatpush1.msra.mxu0 %v351
        %615 = vmatprep.subr.mxu0 %v359
        %616 = vmatpush1.msra.mxu0 %v358
        %617 = vmatprep.subr.mxu0 %v366
        %618 = vmatpush1.msra.mxu0 %v365
        %619 = vmatprep.subr.mxu0 %v373
        %620 = vmatpush1.msra.mxu0 %v372
        %621 = vmatprep.subr.mxu0 %v380
        %622 = vmatpush1.msra.mxu0 %v379
        %623 = vmatprep.subr.mxu0 %v387
        %624 = vmatpush1.msra.mxu0 %v386
        %625 = vmatprep.subr.mxu0 %v394
        %626 = vmatpush1.msra.mxu0 %v393
        %627 = vmatprep.subr.mxu0 %v401
        %628 = vmatpush1.msra.mxu0 %v400
        %629 = vmatprep.subr.mxu0 %v408
        %630 = vmatpush1.msra.mxu0 %v407
        %631 = vmatprep.subr.mxu0 %v415
        %632 = vmatpush1.msra.mxu0 %v414
        %633 = vmatprep.subr.mxu0 %v422
        %634 = vmatpush1.msra.mxu0 %v421
        %635 = vmatprep.subr.mxu0 0.0
        %636 = vmatpush1.msra.mxu0 0.0
        %637 = vmatprep.subr.mxu0 0.0
        %638 = vmatpush1.msra.mxu0 0.0
        %639 = vmatprep.subr.mxu0 0.0
        %640 = vmatpush1.msra.mxu0 0.0
        %641 = vmatprep.subr.mxu0 0.0
        %642 = vmatpush1.msra.mxu0 0.0
        %643 = vmatprep.subr.mxu0 0.0
        %644 = vmatpush1.msra.mxu0 0.0
        %645 = vmatprep.subr.mxu0 0.0
        %646 = vmatpush1.msra.mxu0 0.0
        %647 = vmatprep.subr.mxu0 0.0
        %648 = vmatpush1.msra.mxu0 0.0
        %649 = vmatprep.subr.mxu0 0.0
        %650 = vmatpush1.msra.mxu0 0.0
        %651 = vmatprep.subr.mxu0 0.0
        %652 = vmatpush1.msra.mxu0 0.0
        %653 = vmatprep.subr.mxu0 0.0
        %654 = vmatpush1.msra.mxu0 0.0
        %655 = vmatprep.subr.mxu0 0.0
        %656 = vmatpush1.msra.mxu0 0.0
        %657 = vmatprep.subr.mxu0 0.0
        %658 = vmatpush1.msra.mxu0 0.0
        %659 = vmatprep.subr.mxu0 0.0
        %660 = vmatpush1.msra.mxu0 0.0
        %661 = vmatprep.subr.mxu0 0.0
        %662 = vmatpush1.msra.mxu0 0.0
        %663 = vmatprep.subr.mxu0 0.0
        %664 = vmatpush1.msra.mxu0 0.0
        %665 = vmatprep.subr.mxu0 0.0
        %666 = vmatpush1.msra.mxu0 0.0
        %667 = vmatprep.mubr.f32.mxu0 0.0
        %668 = vmatmul.mubr.f32.gmra.mrb[0].mxu0 %v311
        %v669 = vpop.f32.mrb[0].mxu0
        %v670 = vadd.f32 %v445, %v669
        %v671 = vpop.f32.mrb[0].mxu0
        %v672 = vadd.f32 %v449, %v671
        %673 = vdwg.mxu0
        %674 = vmatprep.subr.mxu0 0.0
        %675 = vmatpush1.msra.mxu0 %v318
        %676 = vmatprep.subr.mxu0 0.0
        %677 = vmatpush1.msra.mxu0 %v325
        %678 = vmatprep.subr.mxu0 0.0
        %679 = vmatpush1.msra.mxu0 %v332
        %680 = vmatprep.subr.mxu0 0.0
        %681 = vmatpush1.msra.mxu0 %v339
        %682 = vmatprep.subr.mxu0 0.0
        %683 = vmatpush1.msra.mxu0 %v346
        %684 = vmatprep.subr.mxu0 0.0
        %685 = vmatpush1.msra.mxu0 %v353
        %686 = vmatprep.subr.mxu0 0.0
        %687 = vmatpush1.msra.mxu0 %v360
        %688 = vmatprep.subr.mxu0 0.0
        %689 = vmatpush1.msra.mxu0 %v367
        %690 = vmatprep.subr.mxu0 0.0
        %691 = vmatpush1.msra.mxu0 %v374
        %692 = vmatprep.subr.mxu0 0.0
        %693 = vmatpush1.msra.mxu0 %v381
        %694 = vmatprep.subr.mxu0 0.0
        %695 = vmatpush1.msra.mxu0 %v388
        %696 = vmatprep.subr.mxu0 0.0
        %697 = vmatpush1.msra.mxu0 %v395
        %698 = vmatprep.subr.mxu0 0.0
        %699 = vmatpush1.msra.mxu0 %v402
        %700 = vmatprep.subr.mxu0 0.0
        %701 = vmatpush1.msra.mxu0 %v409
        %702 = vmatprep.subr.mxu0 0.0
        %703 = vmatpush1.msra.mxu0 %v416
        %704 = vmatprep.subr.mxu0 0.0
        %705 = vmatpush1.msra.mxu0 %v423
        %706 = vmatprep.subr.mxu0 0.0
        %707 = vmatpush1.msra.mxu0 0.0
        %708 = vmatprep.subr.mxu0 0.0
        %709 = vmatpush1.msra.mxu0 0.0
        %710 = vmatprep.subr.mxu0 0.0
        %711 = vmatpush1.msra.mxu0 0.0
        %712 = vmatprep.subr.mxu0 0.0
        %713 = vmatpush1.msra.mxu0 0.0
        %714 = vmatprep.subr.mxu0 0.0
        %715 = vmatpush1.msra.mxu0 0.0
        %716 = vmatprep.subr.mxu0 0.0
        %717 = vmatpush1.msra.mxu0 0.0
        %718 = vmatprep.subr.mxu0 0.0
        %719 = vmatpush1.msra.mxu0 0.0
        %720 = vmatprep.subr.mxu0 0.0
        %721 = vmatpush1.msra.mxu0 0.0
        %722 = vmatprep.subr.mxu0 0.0
        %723 = vmatpush1.msra.mxu0 0.0
        %724 = vmatprep.subr.mxu0 0.0
        %725 = vmatpush1.msra.mxu0 0.0
        %726 = vmatprep.subr.mxu0 0.0
        %727 = vmatpush1.msra.mxu0 0.0
        %728 = vmatprep.subr.mxu0 0.0
        %729 = vmatpush1.msra.mxu0 0.0
        %730 = vmatprep.subr.mxu0 0.0
        %731 = vmatpush1.msra.mxu0 0.0
        %732 = vmatprep.subr.mxu0 0.0
        %733 = vmatpush1.msra.mxu0 0.0
        %734 = vmatprep.subr.mxu0 0.0
        %735 = vmatpush1.msra.mxu0 0.0
        %736 = vmatprep.subr.mxu0 0.0
        %737 = vmatpush1.msra.mxu0 0.0
        %738 = vmatprep.mubr.f32.mxu0 0.0
        %739 = vmatmul.mubr.f32.gmra.mrb[0].mxu0 %v311
        %v740 = vpop.f32.mrb[0].mxu0
        %v741 = vadd.f32 %v453, %v740
        %v742 = vpop.f32.mrb[0].mxu0
        %743 = vdwg.mxu0
        %744 = vst [vmem:[%s215] sm:$0xff] %v528
        %745 = vst [vmem:[%s215 + $0x8] sm:$0xff] %v530
        %746 = vst [vmem:[%s215 + $0x10] sm:$0xff] %v599
        %747 = vst [vmem:[%s215 + $0x18] sm:$0xff] %v601
        %748 = vst [vmem:[%s215 + $0x20] sm:$0xff] %v670
        %749 = vst [vmem:[%s215 + $0x28] sm:$0xff] %v672
        %vm750 = vcmask 130048
        %751 = vst.msk [vmem:[%s215 + $0x30] sm:$0xff] %vm750, %v741
        %s752 = sand.u32 %s137, 1
        %s753 = scalar_lea.sflag [#allocation3], %s752
        %s754 = sand.u32 %s137, 1
        %s755 = smul.addr %s754, 56
        %s756 = scalar_lea.vmem [#allocation2], %s755
        // Predicated region
        $region41: #{tpu_custom_call.1} parent=39 // pred_check
          %p757 = pneg %p147
        $region42: #{tpu_custom_call.1} parent=39 // pred_check_branch
          %759 = sbr.rel (%p757) target = $region44
        $region43: #{tpu_custom_call.1} parent=39 // pred_region
          %s761 = ssub.s32 896, 896
          %762 = vsyncadd %s753, %s761
          %s763 = smul.addr %s19, 7
          %s764 = smul.addr %s763, 128
          %s765 = scalar_lea.hbm %s5, %s764
          %s767 = sshll.u32 %s756, 4
          %s768 = int_to_ptr.vmem [resolvable:$true] %s767
          %770 = dma.vmem_to_hbm [thread:$0]  %s768, 896, %s765, %s753
        $region44: #{tpu_custom_call.1} parent=39 // pred_fallthru
          _
      $region40: #{tpu_custom_call.1} parent=5 // pred_fallthru
        _
      %p771 = scmp.le.s32.totalorder 2, %s14
      // Predicated region
      $region45: #{tpu_custom_call.1} parent=5 // pred_check
        %p772 = pneg %p771
      $region46: #{tpu_custom_call.1} parent=5 // pred_check_branch
        %774 = sbr.rel (%p772) target = $region48
      $region47: #{tpu_custom_call.1} parent=5 // pred_region
        %s775 = ssub.s32 %s14, 2
        // Predicated region
        $region49: #{tpu_custom_call.1} parent=47 // pred_check
          %p776 = pneg %p153
        $region50: #{tpu_custom_call.1} parent=47 // pred_check_branch
          %778 = sbr.rel (%p776) target = $region52
        $region51: #{tpu_custom_call.1} parent=47 // pred_region
          %s779 = sand.u32 %s138, 1
          %s780 = scalar_lea.sflag [#allocation3], %s779
          %s781 = sand.u32 %s138, 1
          %s782 = smul.addr %s781, 56
          %s783 = scalar_lea.vmem [#allocation2], %s782
          %784 = dma.done %s780, 896
        $region52: #{tpu_custom_call.1} parent=47 // pred_fallthru
          _
      $region48: #{tpu_custom_call.1} parent=5 // pred_fallthru
        _
    $region6: #{tpu_custom_call.1} parent=1 // loop_footer
      %s18 = sadd.s32 1, %s14
    $region7: #{tpu_custom_call.1} parent=1 // loop_footer_branch
      %13 = sbr.rel target = $region3
    $region8: #{tpu_custom_call.1} parent=1 // loop_exit
      _
    %785 = vsyncpa [#allocation3], 1
    %s786 = scalar_lea.sflag [#allocation3], 1
    %787 = vsyncpa %s786, 1

</llo_original>
